<compile_context>
chip_gen: v7x
topology: tpu7x:2x2x1
jax: 0.10.0
libtpu: 0.0.40
codegen_flags: <defaults>
</compile_context>

<pallas_src>
import functools

import jax
import jax.numpy as jnp
from jax.experimental import pallas as pl
from jax.experimental.pallas import tpu as pltpu

BN_EPS = 1e-5
LANE = 128
SUBLANE = 8


def _round_up(x, m):
    return ((x + m - 1) // m) * m


def _nbytes(shape, dtype):
    n = 1
    for s in shape:
        n *= int(s)
    return n * jnp.dtype(dtype).itemsize


# --------------------------------------------------------------------------
# Kernel
# --------------------------------------------------------------------------
def _fused_mlp_kernel(x_ref, *refs, num_layers, n_valid):
    """Entire MLP in one kernel; the running activation never leaves VMEM.

    x_ref        : (Np, Din_p)  f32 zero-padded input (rows >= n_valid are pad)
    refs[:L]     : per-layer weights, (fan_in_p, fan_out_p) bf16, zero-padded
    refs[L]      : bgb (L, 8, Dbgb) f32; row 0 = bias, 1 = BN gamma, 2 = BN beta
    refs[L+1]    : output (Np, Dout_p) f32
    """
    w_refs = refs[:num_layers]
    bgb_ref = refs[num_layers]
    o_ref = refs[num_layers + 1]

    n_rows = x_ref.shape[0]
    inv_n = 1.0 / float(n_valid)

    # Row-validity mask for BN statistics, hoisted out of the layer loop.
    if n_valid == n_rows:
        mask = None
    else:
        row_ids = jax.lax.broadcasted_iota(jnp.int32, (n_rows, 1), 0)
        mask = (row_ids < n_valid).astype(jnp.float32)

    act = x_ref[...]  # f32; cast to bf16 only at the MXU input.

    # Hidden layers: Linear -> BatchNorm1d (batch stats, biased var) -> ReLU.
    for layer in range(num_layers - 1):
        w = w_refs[layer][...]                               # (fi_p, fo_p) bf16
        fo = w.shape[1]
        bgb = bgb_ref[layer]                                 # (8, Dbgb) f32
        z = jnp.dot(act.astype(jnp.bfloat16), w,
                    preferred_element_type=jnp.float32)
        z = z + bgb[0:1, :fo]                                # bias

        # Two-pass batch statistics (biased variance), padded rows masked out.
        zm = z if mask is None else z * mask
        mean = jnp.sum(zm, axis=0, keepdims=True) * inv_n
        centered = z - mean
        cm = centered if mask is None else centered * mask
        var = jnp.sum(cm * cm, axis=0, keepdims=True) * inv_n
        inv_std = jax.lax.rsqrt(var + BN_EPS)

        y = bgb[1:2, :fo] * centered * inv_std + bgb[2:3, :fo]  # gamma / beta
        act = jnp.maximum(y, 0.0)                                # ReLU

    # Final projection (no BN, no activation).
    last = num_layers - 1
    w = w_refs[last][...]
    z = jnp.dot(act.astype(jnp.bfloat16), w, preferred_element_type=jnp.float32)
    o_ref[...] = (z + bgb_ref[last][0:1, :o_ref.shape[1]]).astype(o_ref.dtype)


# --------------------------------------------------------------------------
# Parameter construction / packing
# --------------------------------------------------------------------------
def init_mlp_gad_nr_params(key, in_dim, hid_dim, out_dim, num_layers):
    """Synthetic parameters matching the PyTorch module's shapes (f32)."""
    assert num_layers >= 1
    params = {"linears": [], "bns": []}
    dims = ([in_dim, out_dim] if num_layers == 1
            else [in_dim] + [hid_dim] * (num_layers - 1) + [out_dim])
    keys = jax.random.split(key, num_layers * 2)
    ki = 0
    for l in range(num_layers):
        fan_in, fan_out = dims[l], dims[l + 1]
        bound = 1.0 / jnp.sqrt(fan_in)
        # stored pre-transposed: (fan_in, fan_out)
        w = jax.random.uniform(keys[ki], (fan_in, fan_out), jnp.float32, -bound, bound)
        ki += 1
        b = jax.random.uniform(keys[ki], (1, fan_out), jnp.float32, -bound, bound)
        ki += 1
        params["linears"].append((w, b))
    for _ in range(num_layers - 1):
        # BatchNorm1d(hid_dim): gamma = 1, beta = 0 at init (training mode).
        params["bns"].append((jnp.ones((1, hid_dim), jnp.float32),
                              jnp.zeros((1, hid_dim), jnp.float32)))
    return params


def pack_mlp_params(params, num_layers):
    """Per-layer zero-padded bf16 weights + one small f32 bias/gamma/beta slab."""
    fan_outs = [params["linears"][l][0].shape[1] for l in range(num_layers)]
    d_bgb = max(_round_up(fo, LANE) for fo in fan_outs)
    bgb = jnp.zeros((num_layers, SUBLANE, d_bgb), jnp.float32)
    w_list = []
    for l in range(num_layers):
        w, b = params["linears"][l]
        fi, fo = w.shape
        fi_p, fo_p = _round_up(fi, LANE), _round_up(fo, LANE)
        wp = jnp.zeros((fi_p, fo_p), jnp.float32).at[:fi, :fo].set(w)
        w_list.append(wp.astype(jnp.bfloat16))
        bgb = bgb.at[l, 0, :fo].set(jnp.reshape(b, (-1,)))
        if l < num_layers - 1:
            gamma, beta = params["bns"][l]
            bgb = bgb.at[l, 1, :fo].set(jnp.reshape(gamma, (-1,)))
            bgb = bgb.at[l, 2, :fo].set(jnp.reshape(beta, (-1,)))
    return tuple(w_list), bgb


# --------------------------------------------------------------------------
# Host wrapper
# --------------------------------------------------------------------------
@functools.partial(jax.jit, static_argnames=("out_dim",))
def mlp_gad_nr_forward(x, w_list, bgb, *, out_dim):
    num_layers = len(w_list)
    n, f = x.shape
    in_pad = w_list[0].shape[0]
    out_pad = w_list[-1].shape[1]
    n_pad = _round_up(max(n, SUBLANE), SUBLANE)

    # Lane/sublane-dense, zero-padded input slab (f32).
    x_p = jnp.zeros((n_pad, in_pad), jnp.float32).at[:n, :f].set(
        x.astype(jnp.float32))

    kernel = functools.partial(_fused_mlp_kernel,
                               num_layers=num_layers, n_valid=n)

    # Real (per-layer padded) cost model.
    flops = sum(2 * n_pad * w.shape[0] * w.shape[1] for w in w_list)
    transcendentals = sum(w.shape[1] for w in w_list[:num_layers - 1])
    param_bytes = (sum(_nbytes(w.shape, w.dtype) for w in w_list)
                   + _nbytes(bgb.shape, bgb.dtype))
    io_bytes = _nbytes(x_p.shape, jnp.float32) + _nbytes((n_pad, out_pad), jnp.float32)
    bytes_accessed = param_bytes + io_bytes

    # VMEM budget from the actual footprint (x2 for input double-buffering,
    # plus a few f32 activation temporaries and 1 MiB headroom).
    widths = [in_pad] + [w.shape[1] for w in w_list]
    act_bytes = 4 * n_pad * max(widths) * 4
    vmem_limit = int(min(100 * 1024 * 1024,
                         max(2 * (param_bytes + io_bytes) + act_bytes + (1 << 20),
                             8 * 1024 * 1024)))

    in_specs = [pl.BlockSpec((n_pad, in_pad), lambda: (0, 0))]
    for w in w_list:
        in_specs.append(pl.BlockSpec(w.shape, lambda: (0, 0)))
    in_specs.append(pl.BlockSpec(bgb.shape, lambda: (0, 0, 0)))

    out_p = pl.pallas_call(
        kernel,
        out_shape=jax.ShapeDtypeStruct((n_pad, out_pad), jnp.float32),
        in_specs=in_specs,
        out_specs=pl.BlockSpec((n_pad, out_pad), lambda: (0, 0)),
        compiler_params=pltpu.CompilerParams(vmem_limit_bytes=vmem_limit),
        cost_estimate=pl.CostEstimate(flops=flops,
                                      transcendentals=transcendentals,
                                      bytes_accessed=bytes_accessed),
    )(x_p, *w_list, bgb)

    return out_p[:n, :out_dim]


# --------------------------------------------------------------------------
# References
# --------------------------------------------------------------------------
def ref_forward_f32(x, params, num_layers):
    """Pure-f32 JAX reference of the module's training-mode forward."""
    h = x
    for layer in range(num_layers - 1):
        w, b = params["linears"][layer]
        gamma, beta = params["bns"][layer]
        z = h @ w + jnp.reshape(b, (1, -1))
        mean = z.mean(0, keepdims=True)
        var = ((z - mean) ** 2).mean(0, keepdims=True)
        h = jnp.maximum(gamma * (z - mean) / jnp.sqrt(var + BN_EPS) + beta, 0.0)
    w, b = params["linears"][num_layers - 1]
    return h @ w + jnp.reshape(b, (1, -1))


def ref_forward_bf16_matmul(x, params, num_layers):
    """Same semantics with matmul operands rounded to bf16 (matches kernel numerics)."""
    def bdot(a, b):
        return jnp.dot(a.astype(jnp.bfloat16), b.astype(jnp.bfloat16),
                       preferred_element_type=jnp.float32)
    h = x.astype(jnp.float32)
    for layer in range(num_layers - 1):
        w, b = params["linears"][layer]
        gamma, beta = params["bns"][layer]
        z = bdot(h, w) + jnp.reshape(b, (1, -1))
        mean = z.mean(0, keepdims=True)
        centered = z - mean
        var = (centered ** 2).mean(0, keepdims=True)
        h = jnp.maximum(gamma * centered * jax.lax.rsqrt(var + BN_EPS) + beta, 0.0)
    w, b = params["linears"][num_layers - 1]
    return bdot(h, w) + jnp.reshape(b, (1, -1))


def _run_case(key_x, key_p, n, in_dim, hid_dim, out_dim, num_layers):
    x = jax.random.normal(key_x, (n, in_dim), jnp.float32)
    params = init_mlp_gad_nr_params(key_p, in_dim, hid_dim, out_dim, num_layers)
    w_list, bgb = pack_mlp_params(params, num_layers)

    out = jax.block_until_ready(mlp_gad_nr_forward(x, w_list, bgb, out_dim=out_dim))
    assert out.shape == (n, out_dim), out.shape

    # Tight check against a reference using the same bf16-operand matmuls.
    ref_m = ref_forward_bf16_matmul(x, params, num_layers)
    assert jnp.allclose(out, ref_m, atol=1e-3, rtol=1e-3), \
        float(jnp.max(jnp.abs(out - ref_m)))

    # Loose semantic check vs. the pure-f32 module forward (bf16 weights are a
    # deliberate perf trade-off; tolerance covers bf16 rounding through BN).
    ref_f = ref_forward_f32(x, params, num_layers)
    assert jnp.allclose(out, ref_f, atol=1e-1, rtol=1e-1), \
        float(jnp.max(jnp.abs(out - ref_f)))


if __name__ == "__main__":
    key = jax.random.PRNGKey(0)
    ks = jax.random.split(key, 6)

    # Small shapes consistent with GAD-NR usage: x is [num_nodes, in_dim].
    _run_case(ks[0], ks[1], n=8, in_dim=32, hid_dim=64, out_dim=16, num_layers=3)

    # Ragged shapes: exercise row + feature padding and the in-kernel BN row mask.
    _run_case(ks[2], ks[3], n=10, in_dim=37, hid_dim=64, out_dim=16, num_layers=3)

    # num_layers == 1: the module's pure-Linear path.
    _run_case(ks[4], ks[5], n=8, in_dim=32, hid_dim=64, out_dim=16, num_layers=1)

    print("KERNEL_OK")
</pallas_src>

<mosaic_0001>
module attributes {stable_mosaic.version = 11 : i64} {
  func.func @_fused_mlp_kernel(%arg0: memref<8x128xf32, #tpu.memory_space<vmem>>, %arg1: memref<128x128xbf16, #tpu.memory_space<vmem>>, %arg2: memref<128x128xbf16, #tpu.memory_space<vmem>>, %arg3: memref<128x128xbf16, #tpu.memory_space<vmem>>, %arg4: memref<3x8x128xf32, #tpu.memory_space<vmem>>, %arg5: memref<8x128xf32, #tpu.memory_space<vmem>>) attributes {dimension_semantics = [], scalar_prefetch = 0 : i64, scratch_operands = 0 : i64, tpu.core_type = #tpu.core_type<tc>} {
    %c0 = arith.constant 0 : index
    %c0_0 = arith.constant 0 : index
    %0 = vector.load %arg0[%c0, %c0_0] : memref<8x128xf32, #tpu.memory_space<vmem>>, vector<8x128xf32>
    %c0_1 = arith.constant 0 : index
    %c0_2 = arith.constant 0 : index
    %1 = vector.load %arg1[%c0_1, %c0_2] : memref<128x128xbf16, #tpu.memory_space<vmem>>, vector<128x128xbf16>
    %c0_3 = arith.constant 0 : index
    %c0_4 = arith.constant 0 : index
    %c0_5 = arith.constant 0 : index
    %2 = vector.load %arg4[%c0_3, %c0_4, %c0_5] : memref<3x8x128xf32, #tpu.memory_space<vmem>>, vector<1x8x128xf32>
    %3 = vector.shape_cast %2 : vector<1x8x128xf32> to vector<8x128xf32>
    %4 = arith.truncf %0 : vector<8x128xf32> to vector<8x128xbf16>
    %cst = arith.constant dense<0.000000e+00> : vector<8x128xf32>
    %5 = tpu.matmul %4, %1, %cst {dimension_numbers = #tpu.dot_dimension_numbers<[1], [0], [0], [1], [0, 0, 1, 1], [], []>} : vector<8x128xbf16>, vector<128x128xbf16>, vector<8x128xf32> -> vector<8x128xf32>
    %6 = vector.extract_strided_slice %3 {offsets = [0, 0], sizes = [1, 128], strides = [1, 1]} : vector<8x128xf32> to vector<1x128xf32>
    %7 = vector.broadcast %6 : vector<1x128xf32> to vector<8x128xf32>
    %8 = arith.addf %5, %7 : vector<8x128xf32>
    %cst_6 = arith.constant dense<0.000000e+00> : vector<128xf32>
    %9 = vector.multi_reduction <add>, %8, %cst_6 [0] : vector<8x128xf32> to vector<128xf32>
    %10 = vector.shape_cast %9 : vector<128xf32> to vector<1x128xf32>
    %cst_7 = arith.constant 1.250000e-01 : f32
    %11 = vector.broadcast %cst_7 : f32 to vector<1x128xf32>
    %12 = arith.mulf %10, %11 : vector<1x128xf32>
    %13 = vector.broadcast %12 : vector<1x128xf32> to vector<8x128xf32>
    %14 = arith.subf %8, %13 : vector<8x128xf32>
    %15 = arith.mulf %14, %14 : vector<8x128xf32>
    %cst_8 = arith.constant dense<0.000000e+00> : vector<128xf32>
    %16 = vector.multi_reduction <add>, %15, %cst_8 [0] : vector<8x128xf32> to vector<128xf32>
    %17 = vector.shape_cast %16 : vector<128xf32> to vector<1x128xf32>
    %cst_9 = arith.constant 1.250000e-01 : f32
    %18 = vector.broadcast %cst_9 : f32 to vector<1x128xf32>
    %19 = arith.mulf %17, %18 : vector<1x128xf32>
    %cst_10 = arith.constant 9.99999974E-6 : f32
    %20 = vector.broadcast %cst_10 : f32 to vector<1x128xf32>
    %21 = arith.addf %19, %20 : vector<1x128xf32>
    %22 = math.rsqrt %21 : vector<1x128xf32>
    %23 = vector.extract_strided_slice %3 {offsets = [1, 0], sizes = [1, 128], strides = [1, 1]} : vector<8x128xf32> to vector<1x128xf32>
    %24 = vector.broadcast %23 : vector<1x128xf32> to vector<8x128xf32>
    %25 = arith.mulf %24, %14 : vector<8x128xf32>
    %26 = vector.broadcast %22 : vector<1x128xf32> to vector<8x128xf32>
    %27 = arith.mulf %25, %26 : vector<8x128xf32>
    %28 = vector.extract_strided_slice %3 {offsets = [2, 0], sizes = [1, 128], strides = [1, 1]} : vector<8x128xf32> to vector<1x128xf32>
    %29 = vector.broadcast %28 : vector<1x128xf32> to vector<8x128xf32>
    %30 = arith.addf %27, %29 : vector<8x128xf32>
    %cst_11 = arith.constant 0.000000e+00 : f32
    %31 = vector.broadcast %cst_11 : f32 to vector<8x128xf32>
    %32 = arith.maximumf %30, %31 : vector<8x128xf32>
    %c0_12 = arith.constant 0 : index
    %c0_13 = arith.constant 0 : index
    %33 = vector.load %arg2[%c0_12, %c0_13] : memref<128x128xbf16, #tpu.memory_space<vmem>>, vector<128x128xbf16>
    %c1 = arith.constant 1 : index
    %c0_14 = arith.constant 0 : index
    %c0_15 = arith.constant 0 : index
    %34 = vector.load %arg4[%c1, %c0_14, %c0_15] : memref<3x8x128xf32, #tpu.memory_space<vmem>>, vector<1x8x128xf32>
    %35 = vector.shape_cast %34 : vector<1x8x128xf32> to vector<8x128xf32>
    %36 = arith.truncf %32 : vector<8x128xf32> to vector<8x128xbf16>
    %cst_16 = arith.constant dense<0.000000e+00> : vector<8x128xf32>
    %37 = tpu.matmul %36, %33, %cst_16 {dimension_numbers = #tpu.dot_dimension_numbers<[1], [0], [0], [1], [0, 0, 1, 1], [], []>} : vector<8x128xbf16>, vector<128x128xbf16>, vector<8x128xf32> -> vector<8x128xf32>
    %38 = vector.extract_strided_slice %35 {offsets = [0, 0], sizes = [1, 128], strides = [1, 1]} : vector<8x128xf32> to vector<1x128xf32>
    %39 = vector.broadcast %38 : vector<1x128xf32> to vector<8x128xf32>
    %40 = arith.addf %37, %39 : vector<8x128xf32>
    %cst_17 = arith.constant dense<0.000000e+00> : vector<128xf32>
    %41 = vector.multi_reduction <add>, %40, %cst_17 [0] : vector<8x128xf32> to vector<128xf32>
    %42 = vector.shape_cast %41 : vector<128xf32> to vector<1x128xf32>
    %cst_18 = arith.constant 1.250000e-01 : f32
    %43 = vector.broadcast %cst_18 : f32 to vector<1x128xf32>
    %44 = arith.mulf %42, %43 : vector<1x128xf32>
    %45 = vector.broadcast %44 : vector<1x128xf32> to vector<8x128xf32>
    %46 = arith.subf %40, %45 : vector<8x128xf32>
    %47 = arith.mulf %46, %46 : vector<8x128xf32>
    %cst_19 = arith.constant dense<0.000000e+00> : vector<128xf32>
    %48 = vector.multi_reduction <add>, %47, %cst_19 [0] : vector<8x128xf32> to vector<128xf32>
    %49 = vector.shape_cast %48 : vector<128xf32> to vector<1x128xf32>
    %cst_20 = arith.constant 1.250000e-01 : f32
    %50 = vector.broadcast %cst_20 : f32 to vector<1x128xf32>
    %51 = arith.mulf %49, %50 : vector<1x128xf32>
    %cst_21 = arith.constant 9.99999974E-6 : f32
    %52 = vector.broadcast %cst_21 : f32 to vector<1x128xf32>
    %53 = arith.addf %51, %52 : vector<1x128xf32>
    %54 = math.rsqrt %53 : vector<1x128xf32>
    %55 = vector.extract_strided_slice %35 {offsets = [1, 0], sizes = [1, 128], strides = [1, 1]} : vector<8x128xf32> to vector<1x128xf32>
    %56 = vector.broadcast %55 : vector<1x128xf32> to vector<8x128xf32>
    %57 = arith.mulf %56, %46 : vector<8x128xf32>
    %58 = vector.broadcast %54 : vector<1x128xf32> to vector<8x128xf32>
    %59 = arith.mulf %57, %58 : vector<8x128xf32>
    %60 = vector.extract_strided_slice %35 {offsets = [2, 0], sizes = [1, 128], strides = [1, 1]} : vector<8x128xf32> to vector<1x128xf32>
    %61 = vector.broadcast %60 : vector<1x128xf32> to vector<8x128xf32>
    %62 = arith.addf %59, %61 : vector<8x128xf32>
    %cst_22 = arith.constant 0.000000e+00 : f32
    %63 = vector.broadcast %cst_22 : f32 to vector<8x128xf32>
    %64 = arith.maximumf %62, %63 : vector<8x128xf32>
    %c0_23 = arith.constant 0 : index
    %c0_24 = arith.constant 0 : index
    %65 = vector.load %arg3[%c0_23, %c0_24] : memref<128x128xbf16, #tpu.memory_space<vmem>>, vector<128x128xbf16>
    %66 = arith.truncf %64 : vector<8x128xf32> to vector<8x128xbf16>
    %cst_25 = arith.constant dense<0.000000e+00> : vector<8x128xf32>
    %67 = tpu.matmul %66, %65, %cst_25 {dimension_numbers = #tpu.dot_dimension_numbers<[1], [0], [0], [1], [0, 0, 1, 1], [], []>} : vector<8x128xbf16>, vector<128x128xbf16>, vector<8x128xf32> -> vector<8x128xf32>
    %c2 = arith.constant 2 : index
    %c0_26 = arith.constant 0 : index
    %c0_27 = arith.constant 0 : index
    %68 = vector.load %arg4[%c2, %c0_26, %c0_27] : memref<3x8x128xf32, #tpu.memory_space<vmem>>, vector<1x8x128xf32>
    %69 = vector.shape_cast %68 : vector<1x8x128xf32> to vector<8x128xf32>
    %70 = vector.extract_strided_slice %69 {offsets = [0, 0], sizes = [1, 128], strides = [1, 1]} : vector<8x128xf32> to vector<1x128xf32>
    %71 = vector.broadcast %70 : vector<1x128xf32> to vector<8x128xf32>
    %72 = arith.addf %67, %71 : vector<8x128xf32>
    %c0_28 = arith.constant 0 : index
    %c0_29 = arith.constant 0 : index
    %73 = vector.load %arg5[%c0_28, %c0_29] : memref<8x128xf32, #tpu.memory_space<vmem>>, vector<8x128xf32>
    tpu.vector_store %arg5[%c0_28, %c0_29], %72 {strides = array<i32>} : memref<8x128xf32, #tpu.memory_space<vmem>>, vector<8x128xf32>,
    return
  }
}

</mosaic_0001>

<llo_original>
// kernel: mlp_gad_nr_forward.1
$region0: #{mlp_gad_nr_forward.1}
  #allocation0 [shape = 'u32[]', space=smem, size = 0x4, offset = 0x4, fixed_abs, tag = 'smem constant byte address 0x4 - core index']
  #allocation1 [shape = 'u32[144,128]{1,0:T(1,128)}', space=vmem, size = 0x12000, scoped, tag = 'internal scratch']
  %s0 = inlined_call_operand.vmem [shape: f32[8,128], index: 0, kind: input, shape index: {}]
  %s1 = inlined_call_operand.hbm [shape: bf16[128,128], index: 1, kind: input, shape index: {}]
  %s2 = inlined_call_operand.hbm [shape: bf16[128,128], index: 2, kind: input, shape index: {}]
  %s3 = inlined_call_operand.hbm [shape: bf16[128,128], index: 3, kind: input, shape index: {}]
  %s4 = inlined_call_operand.vmem [shape: f32[3,8,128], index: 4, kind: input, shape index: {}]
  %s5 = inlined_call_operand.hbm [shape: f32[8,128], index: 5, kind: output, shape index: {}]
  %s6 = sld [smem:[#allocation0]]
  $region42: #{mlp_gad_nr_forward.1} parent=0
    _
  %s8 = ssub.s32 1, %s6
  %s9 = scalar_select 0, %s8, %s6
  $region1: #{mlp_gad_nr_forward.1} parent=0
    #allocation2 [shape = 'u8[32768]{0}', space=vmem, size = 0x8000, scoped, tag = 'input window, operand 1, single buffered']
    #allocation3 [shape = 's32[1]{0}', space=sflag, size = 0x4, scoped, tag = 'scoped memory for mlp_gad_nr_forward.1']
    #allocation4 [shape = 's32[1]{0}', space=sflag, size = 0x4, scoped, tag = 'scoped memory for mlp_gad_nr_forward.1']
    #allocation5 [shape = 'u8[32768]{0}', space=vmem, size = 0x8000, scoped, tag = 'input window, operand 2, single buffered']
    #allocation6 [shape = 's32[1]{0}', space=sflag, size = 0x4, scoped, tag = 'scoped memory for mlp_gad_nr_forward.1']
    #allocation7 [shape = 'u8[32768]{0}', space=vmem, size = 0x8000, scoped, tag = 'input window, operand 3, single buffered']
    #allocation8 [shape = 'u8[4096]{0}', space=vmem, size = 0x1000, scoped, tag = 'output window, operand 0, single buffered']
    %10 = vsyncpa [#allocation3], 0
    %11 = vsyncpa [#allocation6], 0
    %12 = vsyncpa [#allocation4], 0
    // Predicated region
    $region2: #{mlp_gad_nr_forward.1} parent=1 // pred_check
      _
    $region3: #{mlp_gad_nr_forward.1} parent=1 // pred_check_branch
      %14 = sbr.rel (0) target = $region5
    $region4: #{mlp_gad_nr_forward.1} parent=1 // pred_region
      _
    $region5: #{mlp_gad_nr_forward.1} parent=1 // pred_fallthru
      _
    // Predicated region
    $region6: #{mlp_gad_nr_forward.1} parent=1 // pred_check
      _
    $region7: #{mlp_gad_nr_forward.1} parent=1 // pred_check_branch
      %16 = sbr.rel (0) target = $region9
    $region8: #{mlp_gad_nr_forward.1} parent=1 // pred_region
      %s18 = ssub.s32 1024, 1024
      %19 = vsyncadd [#allocation3], %s18
      %s20 = sshll.u32 [#allocation2], 4
      %s21 = int_to_ptr.vmem [resolvable:$true] %s20
      %26 = dma.hbm_to_vmem [thread:$0]  %s1, 1024, %s21, [#allocation3], 64, 64, 4
    $region9: #{mlp_gad_nr_forward.1} parent=1 // pred_fallthru
      _
    // Predicated region
    $region10: #{mlp_gad_nr_forward.1} parent=1 // pred_check
      _
    $region11: #{mlp_gad_nr_forward.1} parent=1 // pred_check_branch
      %28 = sbr.rel (0) target = $region13
    $region12: #{mlp_gad_nr_forward.1} parent=1 // pred_region
      %s30 = ssub.s32 1024, 1024
      %31 = vsyncadd [#allocation6], %s30
      %s32 = sshll.u32 [#allocation5], 4
      %s33 = int_to_ptr.vmem [resolvable:$true] %s32
      %38 = dma.hbm_to_vmem [thread:$0]  %s2, 1024, %s33, [#allocation6], 64, 64, 4
    $region13: #{mlp_gad_nr_forward.1} parent=1 // pred_fallthru
      _
    // Predicated region
    $region14: #{mlp_gad_nr_forward.1} parent=1 // pred_check
      _
    $region15: #{mlp_gad_nr_forward.1} parent=1 // pred_check_branch
      %40 = sbr.rel (0) target = $region17
    $region16: #{mlp_gad_nr_forward.1} parent=1 // pred_region
      %s42 = ssub.s32 1024, 1024
      %43 = vsyncadd [#allocation6], %s42
      %s44 = sshll.u32 [#allocation7], 4
      %s45 = int_to_ptr.vmem [resolvable:$true] %s44
      %50 = dma.hbm_to_vmem [thread:$0]  %s3, 1024, %s45, [#allocation6], 64, 64, 4
    $region17: #{mlp_gad_nr_forward.1} parent=1 // pred_fallthru
      _
    // Predicated region
    $region18: #{mlp_gad_nr_forward.1} parent=1 // pred_check
      _
    $region19: #{mlp_gad_nr_forward.1} parent=1 // pred_check_branch
      %52 = sbr.rel (0) target = $region21
    $region20: #{mlp_gad_nr_forward.1} parent=1 // pred_region
      _
    $region21: #{mlp_gad_nr_forward.1} parent=1 // pred_fallthru
      _
    // Predicated region
    $region22: #{mlp_gad_nr_forward.1} parent=1 // pred_check
      _
    $region23: #{mlp_gad_nr_forward.1} parent=1 // pred_check_branch
      %54 = sbr.rel (0) target = $region25
    $region24: #{mlp_gad_nr_forward.1} parent=1 // pred_region
      %55 = dma.done [#allocation3], 1024
    $region25: #{mlp_gad_nr_forward.1} parent=1 // pred_fallthru
      _
    // Predicated region
    $region26: #{mlp_gad_nr_forward.1} parent=1 // pred_check
      _
    $region27: #{mlp_gad_nr_forward.1} parent=1 // pred_check_branch
      %57 = sbr.rel (0) target = $region29
    $region28: #{mlp_gad_nr_forward.1} parent=1 // pred_region
      %58 = dma.done [#allocation6], 1024
    $region29: #{mlp_gad_nr_forward.1} parent=1 // pred_fallthru
      _
    // Predicated region
    $region30: #{mlp_gad_nr_forward.1} parent=1 // pred_check
      _
    $region31: #{mlp_gad_nr_forward.1} parent=1 // pred_check_branch
      %60 = sbr.rel (0) target = $region33
    $region32: #{mlp_gad_nr_forward.1} parent=1 // pred_region
      %61 = dma.done [#allocation6], 1024
    $region33: #{mlp_gad_nr_forward.1} parent=1 // pred_fallthru
      _
    %v63 = vld [vmem:[%s0] sm:$0xff]
    %v64 = vld [vmem:[#allocation2] sm:$0xf]
    %v65 = vld [vmem:[#allocation2 + $0x4] sm:$0xf]
    %v66 = vld [vmem:[#allocation2 + $0x8] sm:$0xf]
    %v67 = vld [vmem:[#allocation2 + $0xc] sm:$0xf]
    %v68 = vld [vmem:[#allocation2 + $0x10] sm:$0xf]
    %v69 = vld [vmem:[#allocation2 + $0x14] sm:$0xf]
    %v70 = vld [vmem:[#allocation2 + $0x18] sm:$0xf]
    %v71 = vld [vmem:[#allocation2 + $0x1c] sm:$0xf]
    %v72 = vld [vmem:[#allocation2 + $0x20] sm:$0xf]
    %v73 = vld [vmem:[#allocation2 + $0x24] sm:$0xf]
    %v74 = vld [vmem:[#allocation2 + $0x28] sm:$0xf]
    %v75 = vld [vmem:[#allocation2 + $0x2c] sm:$0xf]
    %v76 = vld [vmem:[#allocation2 + $0x30] sm:$0xf]
    %v77 = vld [vmem:[#allocation2 + $0x34] sm:$0xf]
    %v78 = vld [vmem:[#allocation2 + $0x38] sm:$0xf]
    %v79 = vld [vmem:[#allocation2 + $0x3c] sm:$0xf]
    %v80 = vld [vmem:[%s4] sm:$0xff]
    %v81 = vpack.c.bf16 %v63, %v63
    %v82 = vlaneseq
    %v83 = vshrl.u32 %v82, 7
    %v84 = vsub.s32 0, %v83
    %v85 = vrot.slane %v80, %v84
    %v102 = vunpack.c.l.b16 %v64
    %v103 = vunpack.c.l.b16 %v65
    %v104 = vunpack.c.l.b16 %v66
    %v105 = vunpack.c.l.b16 %v67
    %v106 = vunpack.c.l.b16 %v68
    %v107 = vunpack.c.l.b16 %v69
    %v108 = vunpack.c.l.b16 %v70
    %v109 = vunpack.c.l.b16 %v71
    %v110 = vunpack.c.l.b16 %v72
    %v111 = vunpack.c.l.b16 %v73
    %v112 = vunpack.c.l.b16 %v74
    %v113 = vunpack.c.l.b16 %v75
    %v114 = vunpack.c.l.b16 %v76
    %v115 = vunpack.c.l.b16 %v77
    %v116 = vunpack.c.l.b16 %v78
    %v117 = vunpack.c.l.b16 %v79
    %v118 = vpack.c.b16 %v103, %v102
    %v119 = vpack.c.b16 %v105, %v104
    %v120 = vpack.c.b16 %v107, %v106
    %v121 = vpack.c.b16 %v109, %v108
    %v122 = vpack.c.b16 %v111, %v110
    %v123 = vpack.c.b16 %v113, %v112
    %v124 = vpack.c.b16 %v115, %v114
    %v125 = vpack.c.b16 %v117, %v116
    %134 = vmatprep.subr.bf16.mxu0 0
    %135 = vmatpush1.bf16.msra.mxu0 %v118
    %136 = vmatprep.subr.bf16.mxu0 0
    %137 = vmatpush1.bf16.msra.mxu0 %v119
    %138 = vmatprep.subr.bf16.mxu0 0
    %139 = vmatpush1.bf16.msra.mxu0 %v120
    %140 = vmatprep.subr.bf16.mxu0 0
    %141 = vmatpush1.bf16.msra.mxu0 %v121
    %142 = vmatprep.subr.bf16.mxu0 0
    %143 = vmatpush1.bf16.msra.mxu0 %v122
    %144 = vmatprep.subr.bf16.mxu0 0
    %145 = vmatpush1.bf16.msra.mxu0 %v123
    %146 = vmatprep.subr.bf16.mxu0 0
    %147 = vmatpush1.bf16.msra.mxu0 %v124
    %148 = vmatprep.subr.bf16.mxu0 0
    %149 = vmatpush1.bf16.msra.mxu0 %v125
    %150 = vmatprep.subr.bf16.mxu0 0
    %151 = vmatpush1.bf16.msra.mxu0 0
    %152 = vmatprep.subr.bf16.mxu0 0
    %153 = vmatpush1.bf16.msra.mxu0 0
    %154 = vmatprep.subr.bf16.mxu0 0
    %155 = vmatpush1.bf16.msra.mxu0 0
    %156 = vmatprep.subr.bf16.mxu0 0
    %157 = vmatpush1.bf16.msra.mxu0 0
    %158 = vmatprep.subr.bf16.mxu0 0
    %159 = vmatpush1.bf16.msra.mxu0 0
    %160 = vmatprep.subr.bf16.mxu0 0
    %161 = vmatpush1.bf16.msra.mxu0 0
    %162 = vmatprep.subr.bf16.mxu0 0
    %163 = vmatpush1.bf16.msra.mxu0 0
    %164 = vmatprep.subr.bf16.mxu0 0
    %165 = vmatpush1.bf16.msra.mxu0 0
    %166 = vmatprep.mubr.bf16.mxu0 0
    %167 = vmatmul.mubr.bf16.gmra.mrb[0].mxu0 %v81
    %v168 = vpop.f32.mrb[0].mxu0
    %v169 = vadd.f32 %v85, %v168
    %v170 = vpop.f32.mrb[0].mxu0
    %v171 = vpop.f32.mrb[0].mxu0
    %v172 = vpop.f32.mrb[0].mxu0
    %173 = vdwg.mxu0
    %v174 = vrot.slane %v169, 4
    %v175 = vadd.f32 %v169, %v174
    %v176 = vrot.slane %v175, 2
    %v177 = vadd.f32 %v175, %v176
    %v178 = vrot.slane %v177, 1
    %v179 = vadd.f32 %v177, %v178
    %v180 = vmul.f32 %v179, 0.125
    %v181 = vsub.f32 %v169, %v180
    %v182 = vmul.f32 %v181, %v181
    %v183 = vrot.slane %v182, 4
    %v184 = vadd.f32 %v182, %v183
    %v185 = vrot.slane %v184, 2
    %v186 = vadd.f32 %v184, %v185
    %v187 = vrot.slane %v186, 1
    %v188 = vadd.f32 %v186, %v187
    %v189 = vmul.f32 %v188, 0.125
    %v190 = vadd.f32 %v189, 1e-05
    %v191 = vrsqrt.pop %v190
    %v192 = vlaneseq
    %v193 = vshrl.u32 %v192, 7
    %v194 = vsub.s32 1, %v193
    %v195 = vrot.slane %v80, %v194
    %v196 = vmul.f32 %v195, %v181
    %v197 = vmul.f32 %v196, %v191
    %v198 = vlaneseq
    %v199 = vshrl.u32 %v198, 7
    %v200 = vsub.s32 2, %v199
    %v201 = vrot.slane %v80, %v200
    %v202 = vadd.f32 %v197, %v201
    %v203 = vmax.f32 %v202, 0.0
    %v204 = vld [vmem:[#allocation5] sm:$0xf]
    %v205 = vld [vmem:[#allocation5 + $0x4] sm:$0xf]
    %v206 = vld [vmem:[#allocation5 + $0x8] sm:$0xf]
    %v207 = vld [vmem:[#allocation5 + $0xc] sm:$0xf]
    %v208 = vld [vmem:[#allocation5 + $0x10] sm:$0xf]
    %v209 = vld [vmem:[#allocation5 + $0x14] sm:$0xf]
    %v210 = vld [vmem:[#allocation5 + $0x18] sm:$0xf]
    %v211 = vld [vmem:[#allocation5 + $0x1c] sm:$0xf]
    %v212 = vld [vmem:[#allocation5 + $0x20] sm:$0xf]
    %v213 = vld [vmem:[#allocation5 + $0x24] sm:$0xf]
    %v214 = vld [vmem:[#allocation5 + $0x28] sm:$0xf]
    %v215 = vld [vmem:[#allocation5 + $0x2c] sm:$0xf]
    %v216 = vld [vmem:[#allocation5 + $0x30] sm:$0xf]
    %v217 = vld [vmem:[#allocation5 + $0x34] sm:$0xf]
    %v218 = vld [vmem:[#allocation5 + $0x38] sm:$0xf]
    %v219 = vld [vmem:[#allocation5 + $0x3c] sm:$0xf]
    %s220 = scalar_lea.vmem %s4, 8
    %v221 = vld [vmem:[%s220] sm:$0xff]
    %v222 = vpack.c.bf16 %v203, %v203
    %v223 = vlaneseq
    %v224 = vshrl.u32 %v223, 7
    %v225 = vsub.s32 0, %v224
    %v226 = vrot.slane %v221, %v225
    %v243 = vunpack.c.l.b16 %v204
    %v244 = vunpack.c.l.b16 %v205
    %v245 = vunpack.c.l.b16 %v206
    %v246 = vunpack.c.l.b16 %v207
    %v247 = vunpack.c.l.b16 %v208
    %v248 = vunpack.c.l.b16 %v209
    %v249 = vunpack.c.l.b16 %v210
    %v250 = vunpack.c.l.b16 %v211
    %v251 = vunpack.c.l.b16 %v212
    %v252 = vunpack.c.l.b16 %v213
    %v253 = vunpack.c.l.b16 %v214
    %v254 = vunpack.c.l.b16 %v215
    %v255 = vunpack.c.l.b16 %v216
    %v256 = vunpack.c.l.b16 %v217
    %v257 = vunpack.c.l.b16 %v218
    %v258 = vunpack.c.l.b16 %v219
    %v259 = vpack.c.b16 %v244, %v243
    %v260 = vpack.c.b16 %v246, %v245
    %v261 = vpack.c.b16 %v248, %v247
    %v262 = vpack.c.b16 %v250, %v249
    %v263 = vpack.c.b16 %v252, %v251
    %v264 = vpack.c.b16 %v254, %v253
    %v265 = vpack.c.b16 %v256, %v255
    %v266 = vpack.c.b16 %v258, %v257
    %275 = vmatprep.subr.bf16.mxu0 0
    %276 = vmatpush1.bf16.msra.mxu0 %v259
    %277 = vmatprep.subr.bf16.mxu0 0
    %278 = vmatpush1.bf16.msra.mxu0 %v260
    %279 = vmatprep.subr.bf16.mxu0 0
    %280 = vmatpush1.bf16.msra.mxu0 %v261
    %281 = vmatprep.subr.bf16.mxu0 0
    %282 = vmatpush1.bf16.msra.mxu0 %v262
    %283 = vmatprep.subr.bf16.mxu0 0
    %284 = vmatpush1.bf16.msra.mxu0 %v263
    %285 = vmatprep.subr.bf16.mxu0 0
    %286 = vmatpush1.bf16.msra.mxu0 %v264
    %287 = vmatprep.subr.bf16.mxu0 0
    %288 = vmatpush1.bf16.msra.mxu0 %v265
    %289 = vmatprep.subr.bf16.mxu0 0
    %290 = vmatpush1.bf16.msra.mxu0 %v266
    %291 = vmatprep.subr.bf16.mxu0 0
    %292 = vmatpush1.bf16.msra.mxu0 0
    %293 = vmatprep.subr.bf16.mxu0 0
    %294 = vmatpush1.bf16.msra.mxu0 0
    %295 = vmatprep.subr.bf16.mxu0 0
    %296 = vmatpush1.bf16.msra.mxu0 0
    %297 = vmatprep.subr.bf16.mxu0 0
    %298 = vmatpush1.bf16.msra.mxu0 0
    %299 = vmatprep.subr.bf16.mxu0 0
    %300 = vmatpush1.bf16.msra.mxu0 0
    %301 = vmatprep.subr.bf16.mxu0 0
    %302 = vmatpush1.bf16.msra.mxu0 0
    %303 = vmatprep.subr.bf16.mxu0 0
    %304 = vmatpush1.bf16.msra.mxu0 0
    %305 = vmatprep.subr.bf16.mxu0 0
    %306 = vmatpush1.bf16.msra.mxu0 0
    %307 = vmatprep.mubr.bf16.mxu0 0
    %308 = vmatmul.mubr.bf16.gmra.mrb[0].mxu0 %v222
    %v309 = vpop.f32.mrb[0].mxu0
    %v310 = vadd.f32 %v226, %v309
    %v311 = vpop.f32.mrb[0].mxu0
    %v312 = vpop.f32.mrb[0].mxu0
    %v313 = vpop.f32.mrb[0].mxu0
    %314 = vdwg.mxu0
    %v315 = vrot.slane %v310, 4
    %v316 = vadd.f32 %v310, %v315
    %v317 = vrot.slane %v316, 2
    %v318 = vadd.f32 %v316, %v317
    %v319 = vrot.slane %v318, 1
    %v320 = vadd.f32 %v318, %v319
    %v321 = vmul.f32 %v320, 0.125
    %v322 = vsub.f32 %v310, %v321
    %v323 = vmul.f32 %v322, %v322
    %v324 = vrot.slane %v323, 4
    %v325 = vadd.f32 %v323, %v324
    %v326 = vrot.slane %v325, 2
    %v327 = vadd.f32 %v325, %v326
    %v328 = vrot.slane %v327, 1
    %v329 = vadd.f32 %v327, %v328
    %v330 = vmul.f32 %v329, 0.125
    %v331 = vadd.f32 %v330, 1e-05
    %v332 = vrsqrt.pop %v331
    %v333 = vlaneseq
    %v334 = vshrl.u32 %v333, 7
    %v335 = vsub.s32 1, %v334
    %v336 = vrot.slane %v221, %v335
    %v337 = vmul.f32 %v336, %v322
    %v338 = vmul.f32 %v337, %v332
    %v339 = vlaneseq
    %v340 = vshrl.u32 %v339, 7
    %v341 = vsub.s32 2, %v340
    %v342 = vrot.slane %v221, %v341
    %v343 = vadd.f32 %v338, %v342
    %v344 = vmax.f32 %v343, 0.0
    %v345 = vld [vmem:[#allocation7] sm:$0xf]
    %v346 = vld [vmem:[#allocation7 + $0x4] sm:$0xf]
    %v347 = vld [vmem:[#allocation7 + $0x8] sm:$0xf]
    %v348 = vld [vmem:[#allocation7 + $0xc] sm:$0xf]
    %v349 = vld [vmem:[#allocation7 + $0x10] sm:$0xf]
    %v350 = vld [vmem:[#allocation7 + $0x14] sm:$0xf]
    %v351 = vld [vmem:[#allocation7 + $0x18] sm:$0xf]
    %v352 = vld [vmem:[#allocation7 + $0x1c] sm:$0xf]
    %v353 = vld [vmem:[#allocation7 + $0x20] sm:$0xf]
    %v354 = vld [vmem:[#allocation7 + $0x24] sm:$0xf]
    %v355 = vld [vmem:[#allocation7 + $0x28] sm:$0xf]
    %v356 = vld [vmem:[#allocation7 + $0x2c] sm:$0xf]
    %v357 = vld [vmem:[#allocation7 + $0x30] sm:$0xf]
    %v358 = vld [vmem:[#allocation7 + $0x34] sm:$0xf]
    %v359 = vld [vmem:[#allocation7 + $0x38] sm:$0xf]
    %v360 = vld [vmem:[#allocation7 + $0x3c] sm:$0xf]
    %v361 = vpack.c.bf16 %v344, %v344
    %s362 = scalar_lea.vmem %s4, 16
    %v363 = vld [vmem:[%s362] sm:$0xff]
    %v364 = vlaneseq
    %v365 = vshrl.u32 %v364, 7
    %v366 = vsub.s32 0, %v365
    %v367 = vrot.slane %v363, %v366
    %v384 = vunpack.c.l.b16 %v345
    %v385 = vunpack.c.l.b16 %v346
    %v386 = vunpack.c.l.b16 %v347
    %v387 = vunpack.c.l.b16 %v348
    %v388 = vunpack.c.l.b16 %v349
    %v389 = vunpack.c.l.b16 %v350
    %v390 = vunpack.c.l.b16 %v351
    %v391 = vunpack.c.l.b16 %v352
    %v392 = vunpack.c.l.b16 %v353
    %v393 = vunpack.c.l.b16 %v354
    %v394 = vunpack.c.l.b16 %v355
    %v395 = vunpack.c.l.b16 %v356
    %v396 = vunpack.c.l.b16 %v357
    %v397 = vunpack.c.l.b16 %v358
    %v398 = vunpack.c.l.b16 %v359
    %v399 = vunpack.c.l.b16 %v360
    %v400 = vpack.c.b16 %v385, %v384
    %v401 = vpack.c.b16 %v387, %v386
    %v402 = vpack.c.b16 %v389, %v388
    %v403 = vpack.c.b16 %v391, %v390
    %v404 = vpack.c.b16 %v393, %v392
    %v405 = vpack.c.b16 %v395, %v394
    %v406 = vpack.c.b16 %v397, %v396
    %v407 = vpack.c.b16 %v399, %v398
    %416 = vmatprep.subr.bf16.mxu0 0
    %417 = vmatpush1.bf16.msra.mxu0 %v400
    %418 = vmatprep.subr.bf16.mxu0 0
    %419 = vmatpush1.bf16.msra.mxu0 %v401
    %420 = vmatprep.subr.bf16.mxu0 0
    %421 = vmatpush1.bf16.msra.mxu0 %v402
    %422 = vmatprep.subr.bf16.mxu0 0
    %423 = vmatpush1.bf16.msra.mxu0 %v403
    %424 = vmatprep.subr.bf16.mxu0 0
    %425 = vmatpush1.bf16.msra.mxu0 %v404
    %426 = vmatprep.subr.bf16.mxu0 0
    %427 = vmatpush1.bf16.msra.mxu0 %v405
    %428 = vmatprep.subr.bf16.mxu0 0
    %429 = vmatpush1.bf16.msra.mxu0 %v406
    %430 = vmatprep.subr.bf16.mxu0 0
    %431 = vmatpush1.bf16.msra.mxu0 %v407
    %432 = vmatprep.subr.bf16.mxu0 0
    %433 = vmatpush1.bf16.msra.mxu0 0
    %434 = vmatprep.subr.bf16.mxu0 0
    %435 = vmatpush1.bf16.msra.mxu0 0
    %436 = vmatprep.subr.bf16.mxu0 0
    %437 = vmatpush1.bf16.msra.mxu0 0
    %438 = vmatprep.subr.bf16.mxu0 0
    %439 = vmatpush1.bf16.msra.mxu0 0
    %440 = vmatprep.subr.bf16.mxu0 0
    %441 = vmatpush1.bf16.msra.mxu0 0
    %442 = vmatprep.subr.bf16.mxu0 0
    %443 = vmatpush1.bf16.msra.mxu0 0
    %444 = vmatprep.subr.bf16.mxu0 0
    %445 = vmatpush1.bf16.msra.mxu0 0
    %446 = vmatprep.subr.bf16.mxu0 0
    %447 = vmatpush1.bf16.msra.mxu0 0
    %448 = vmatprep.mubr.bf16.mxu0 0
    %449 = vmatmul.mubr.bf16.gmra.mrb[0].mxu0 %v361
    %v450 = vpop.f32.mrb[0].mxu0
    %v451 = vadd.f32 %v367, %v450
    %v452 = vpop.f32.mrb[0].mxu0
    %v453 = vpop.f32.mrb[0].mxu0
    %v454 = vpop.f32.mrb[0].mxu0
    %455 = vdwg.mxu0
    %456 = vst [vmem:[#allocation8] sm:$0xff] %v451
    // Predicated region
    $region34: #{mlp_gad_nr_forward.1} parent=1 // pred_check
      _
    $region35: #{mlp_gad_nr_forward.1} parent=1 // pred_check_branch
      %458 = sbr.rel (0) target = $region37
    $region36: #{mlp_gad_nr_forward.1} parent=1 // pred_region
      %s460 = ssub.s32 128, 128
      %461 = vsyncadd [#allocation4], %s460
      %s463 = sshll.u32 [#allocation8], 4
      %s464 = int_to_ptr.vmem [resolvable:$true] %s463
      %466 = dma.vmem_to_hbm [thread:$0]  %s464, 128, %s5, [#allocation4]
    $region37: #{mlp_gad_nr_forward.1} parent=1 // pred_fallthru
      _
    // Predicated region
    $region38: #{mlp_gad_nr_forward.1} parent=1 // pred_check
      _
    $region39: #{mlp_gad_nr_forward.1} parent=1 // pred_check_branch
      %468 = sbr.rel (0) target = $region41
    $region40: #{mlp_gad_nr_forward.1} parent=1 // pred_region
      %469 = dma.done [#allocation4], 128
    $region41: #{mlp_gad_nr_forward.1} parent=1 // pred_fallthru
      _
    %470 = vsyncpa [#allocation3], 1
    %471 = vsyncpa [#allocation6], 1
    %472 = vsyncpa [#allocation4], 1

</llo_original>
